<compile_context>
chip_gen: v6e
topology: v6e:2x2x1
jax: 0.10.0
libtpu: 0.0.40
codegen_flags: <defaults>
</compile_context>

<pallas_src>
import jax
import jax.numpy as jnp
from jax.experimental import pallas as pl
from jax.experimental.pallas import tpu as pltpu  # noqa: F401  (TPU backend)

# Small deterministic hyper-parameters consistent with the module
# (hidden_size=768 scaled to 32; nhead=8; dim_feedforward=4*hidden;
#  num_layers=1; num_classes=3).
BATCH = 2
SEQ = 8
HIDDEN = 32
NUM_HEADS = 8
HEAD_DIM = HIDDEN // NUM_HEADS
FFN = 4 * HIDDEN
NUM_CLASSES = 3
VOCAB = 50
LN_EPS = 1e-5  # PyTorch TransformerEncoderLayer / LayerNorm default

# ---- packed weight slab layout (192 rows x 128 lanes, f32) ------------------
#   rows [0,32)   : lanes [0,96)   = wqkv (H,3H)   | lanes [96,128) = wo (H,H)
#   rows [32,64)  : lanes [0,128)  = w1   (H,FFN)
#   rows [64,192) : lanes [0,32)   = w2   (FFN,H)
#   rows [64,96)  : lanes [32,64)  = gsum (H,H)  (pre-scaled by 1/sqrt(hd))
#   rows [64,96)  : lanes [64,96)  = wa1  (H,H)   | lanes [96,96+C) = wc (H,C)
ROW_A = 0
ROW_B = 32
ROW_C = 64
W_SLAB_ROWS = ROW_C + FFN          # 192

# ---- packed bias / vector slab layout (one vector per row, 128 lanes) -------
(B_QKV, B_O, B_FF1, B_FF2, B_G1, B_B1, B_G2, B_B2,
 B_A1, B_WA2, B_A2, B_CLS) = range(12)
B_SLAB_ROWS = 12


def _layer_norm(x, gamma, beta):
    mean = jnp.mean(x, axis=-1, keepdims=True)
    var = jnp.mean(jnp.square(x - mean), axis=-1, keepdims=True)
    return (x - mean) * jax.lax.rsqrt(var + LN_EPS) * gamma + beta


# -----------------------------------------------------------------------------
# Fused kernel: transformer encoder layer + attention pooling + classifier.
# x_ref: (B*S, H) activations, batch-major rows (rows 0..S-1 = batch 0, ...).
# w_ref: (W_SLAB_ROWS, 128) co-packed weight slab (layout above).
# b_ref: (B_SLAB_ROWS, 128) packed bias / LayerNorm / small-weight vectors.
# out_ref: (B, NUM_CLASSES) logits (single full-block store).
# -----------------------------------------------------------------------------
def fused_forward_kernel(x_ref, w_ref, b_ref, out_ref):
    H, S, F, C = HIDDEN, SEQ, FFN, NUM_CLASSES
    x = x_ref[...]                                                   # (B*S, H)

    # packed parameter views (static slices; lane splits done on loaded values)
    ga = w_ref[ROW_A:ROW_A + H, :]                                   # (H, 128)
    wqkv = ga[:, 0:3 * H]                                            # (H, 3H)
    wo = ga[:, 3 * H:4 * H]                                          # (H, H)
    w1 = w_ref[ROW_B:ROW_B + H, :]                                   # (H, FFN)
    w2 = w_ref[ROW_C:ROW_C + F, 0:H]                                 # (FFN, H)
    gct = w_ref[ROW_C:ROW_C + H, :]                                  # (H, 128)
    gsum = gct[:, H:2 * H]                                           # (H, H) scaled
    wa1c = gct[:, 2 * H:4 * H]                                       # (H, 2H): wa1|wc|0

    bqkv = b_ref[B_QKV:B_QKV + 1, 0:3 * H]
    bo = b_ref[B_O:B_O + 1, 0:H]
    b1 = b_ref[B_FF1:B_FF1 + 1, 0:F]
    b2 = b_ref[B_FF2:B_FF2 + 1, 0:H]
    g1 = b_ref[B_G1:B_G1 + 1, 0:H]
    be1 = b_ref[B_B1:B_B1 + 1, 0:H]
    g2 = b_ref[B_G2:B_G2 + 1, 0:H]
    be2 = b_ref[B_B2:B_B2 + 1, 0:H]
    ba1 = b_ref[B_A1:B_A1 + 1, 0:H]
    wa2 = b_ref[B_WA2:B_WA2 + 1, 0:H]                                # (1, H)
    ba2 = b_ref[B_A2:B_A2 + 1, 0:1]                                  # (1, 1)
    bc = b_ref[B_CLS:B_CLS + 1, 0:C]                                 # (1, C)

    # ---- multi-head self-attention --------------------------------------
    # batch_first=False semantics: attention length = B (the 2 batch rows),
    # one independent attention problem per sequence position & head.
    qkv = jnp.dot(x, wqkv, preferred_element_type=jnp.float32) + bqkv  # (B*S, 3H)
    q, k, v = qkv[:, 0:H], qkv[:, H:2 * H], qkv[:, 2 * H:3 * H]
    q0, q1 = q[0:S], q[S:2 * S]                                      # (S, H) each
    k0, k1 = k[0:S], k[S:2 * S]
    v0, v1 = v[0:S], v[S:2 * S]

    # per-head scores: (q_i * k_j) summed within each head's 4-lane group via
    # the block-diagonal head-sum matrix (1/sqrt(head_dim) pre-folded) ->
    # score replicated across the head's lanes, so softmax and PV weighting
    # stay purely elementwise (VPU/EUP).
    prod = jnp.concatenate([q0 * k0, q0 * k1, q1 * k0, q1 * k1], axis=0)  # (4S, H)
    s = jnp.dot(prod, gsum, preferred_element_type=jnp.float32)           # (4S, H)
    s00, s01 = s[0:S], s[S:2 * S]
    s10, s11 = s[2 * S:3 * S], s[3 * S:4 * S]

    m0 = jnp.maximum(s00, s01)
    e00, e01 = jnp.exp(s00 - m0), jnp.exp(s01 - m0)
    r0 = pl.reciprocal(e00 + e01, approx=True)
    attn0 = (e00 * r0) * v0 + (e01 * r0) * v1                        # (S, H)

    m1 = jnp.maximum(s10, s11)
    e10, e11 = jnp.exp(s10 - m1), jnp.exp(s11 - m1)
    r1 = pl.reciprocal(e10 + e11, approx=True)
    attn1 = (e10 * r1) * v0 + (e11 * r1) * v1                        # (S, H)

    attn = jnp.concatenate([attn0, attn1], axis=0)                   # (B*S, H)
    attn = jnp.dot(attn, wo, preferred_element_type=jnp.float32) + bo

    # ---- post-norm residuals + ReLU FFN ----------------------------------
    y = _layer_norm(x + attn, g1, be1)
    hmid = jnp.maximum(
        jnp.dot(y, w1, preferred_element_type=jnp.float32) + b1, 0.0)     # (B*S, FFN)
    ff = jnp.dot(hmid, w2, preferred_element_type=jnp.float32) + b2
    z = _layer_norm(y + ff, g2, be2)                                 # transformer out

    # ---- attention pooling with the classifier folded in (linearity) -----
    # [a1_pre | per-token logits] = z @ [wa1 | wc] in a single matmul.
    a1c = jnp.dot(z, wa1c, preferred_element_type=jnp.float32)       # (B*S, 2H)
    a1 = jnp.tanh(a1c[:, 0:H] + ba1)
    tok_logits = a1c[:, H:H + C]                                     # (B*S, C) = z @ wc
    sc = jnp.sum(a1 * wa2, axis=-1, keepdims=True) + ba2             # (B*S, 1)

    sc0, sc1 = sc[0:S], sc[S:2 * S]
    e0 = jnp.exp(sc0 - jnp.max(sc0, axis=0, keepdims=True))
    pw0 = e0 * pl.reciprocal(jnp.sum(e0, axis=0, keepdims=True), approx=True)
    e1 = jnp.exp(sc1 - jnp.max(sc1, axis=0, keepdims=True))
    pw1 = e1 * pl.reciprocal(jnp.sum(e1, axis=0, keepdims=True), approx=True)

    # pooled logits = softmax-weighted sum of per-token logits (+ bias once).
    lg0 = jnp.sum(pw0 * tok_logits[0:S], axis=0, keepdims=True)      # (1, C)
    lg1 = jnp.sum(pw1 * tok_logits[S:2 * S], axis=0, keepdims=True)  # (1, C)
    out_ref[...] = jnp.concatenate([lg0, lg1], axis=0) + bc          # single store


def fused_forward(x_bsh, w_slab, b_slab):
    B, S, H = x_bsh.shape
    x_flat = x_bsh.reshape(B * S, H)                                 # batch-major rows
    return pl.pallas_call(
        fused_forward_kernel,
        out_shape=jax.ShapeDtypeStruct((B, NUM_CLASSES), jnp.float32),
    )(x_flat, w_slab, b_slab)


# -----------------------------------------------------------------------------
# Pack all parameters into two lane-dense slabs (3 kernel operands total).
# Called ONCE at model-load time (hoisted out of the jitted forward).
# -----------------------------------------------------------------------------
def pack_params(p):
    f32 = jnp.float32
    H, F, C = HIDDEN, FFN, NUM_CLASSES

    # Group A: wqkv | wo  -> (H, 128)
    ga = jnp.concatenate([
        jnp.asarray(p["in_proj_weight"], f32).T,        # (H, 3H)
        jnp.asarray(p["out_proj_weight"], f32).T,       # (H, H)
    ], axis=1)

    # Group B: w1 -> (H, FFN) == (H, 128)
    gb = jnp.asarray(p["linear1_weight"], f32).T

    # Group C: w2 | [gsum ; wa1 ; wc]  -> (FFN, 128)
    head_ids = jnp.arange(H) // HEAD_DIM
    gsum = (head_ids[:, None] == head_ids[None, :]).astype(f32) / (HEAD_DIM ** 0.5)
    wa1 = jnp.asarray(p["attn_fc1_weight"], f32).T      # (H, H)
    wc = jnp.asarray(p["classifier_weight"], f32).T     # (H, C)
    top_right = jnp.concatenate(
        [gsum, wa1, wc, jnp.zeros((H, H - C), f32)], axis=1)          # (H, 3H)
    right = jnp.concatenate(
        [top_right, jnp.zeros((F - H, 3 * H), f32)], axis=0)          # (FFN, 3H)
    gc = jnp.concatenate(
        [jnp.asarray(p["linear2_weight"], f32).T, right], axis=1)     # (FFN, 128)

    w_slab = jnp.concatenate([ga, gb, gc], axis=0)      # (W_SLAB_ROWS, 128)

    def row(v):
        v = jnp.asarray(v, f32).reshape(1, -1)
        return jnp.pad(v, ((0, 0), (0, 128 - v.shape[1])))

    b_slab = jnp.concatenate([
        row(p["in_proj_bias"]),           # B_QKV
        row(p["out_proj_bias"]),          # B_O
        row(p["linear1_bias"]),           # B_FF1
        row(p["linear2_bias"]),           # B_FF2
        row(p["norm1_weight"]),           # B_G1
        row(p["norm1_bias"]),             # B_B1
        row(p["norm2_weight"]),           # B_G2
        row(p["norm2_bias"]),             # B_B2
        row(p["attn_fc1_bias"]),          # B_A1
        row(p["attn_fc2_weight"]),        # B_WA2 (second pooling linear weight)
        row(p["attn_fc2_bias"]),          # B_A2
        row(p["classifier_bias"]),        # B_CLS
    ], axis=0)                            # (B_SLAB_ROWS, 128)

    return w_slab, b_slab


# -----------------------------------------------------------------------------
# RoBERTa backbone stand-in (plain JAX glue).
# TODO(synk): the pretrained RobertaModel.from_pretrained backbone cannot be
# reproduced without its checkpoint; replaced by a deterministic synthetic
# embedding (word emb + position emb + LayerNorm) producing last_hidden_state.
# attention_mask is only consumed by the real backbone and is unused here.
# -----------------------------------------------------------------------------
def roberta_standin(input_ids, attention_mask, p):
    del attention_mask
    B, S = input_ids.shape
    tok = p["word_emb"][input_ids]                   # (B, S, H)
    pos = p["pos_emb"][jnp.arange(S)][None]          # (1, S, H)
    x = tok + pos
    mean = jnp.mean(x, -1, keepdims=True)
    var = jnp.mean((x - mean) ** 2, -1, keepdims=True)
    return (x - mean) * jax.lax.rsqrt(var + LN_EPS) * p["emb_ln_weight"] + p["emb_ln_bias"]


@jax.jit
def roberta_sentiment_classifier_forward(input_ids, attention_mask, backbone,
                                         w_slab, b_slab):
    sequence = roberta_standin(input_ids, attention_mask, backbone)   # (B, S, H)
    return fused_forward(sequence, w_slab, b_slab)                    # (B, num_classes)


def init_params(key):
    keys = jax.random.split(key, 16)

    def n(k, shape, scale=0.02):
        return (scale * jax.random.normal(k, shape)).astype(jnp.float32)

    return {
        "word_emb": n(keys[0], (VOCAB, HIDDEN)),
        "pos_emb": n(keys[1], (SEQ, HIDDEN)),
        "emb_ln_weight": jnp.ones((HIDDEN,), jnp.float32),
        "emb_ln_bias": jnp.zeros((HIDDEN,), jnp.float32),
        "in_proj_weight": n(keys[2], (3 * HIDDEN, HIDDEN)),
        "in_proj_bias": n(keys[3], (3 * HIDDEN,)),
        "out_proj_weight": n(keys[4], (HIDDEN, HIDDEN)),
        "out_proj_bias": n(keys[5], (HIDDEN,)),
        "linear1_weight": n(keys[6], (FFN, HIDDEN)),
        "linear1_bias": n(keys[7], (FFN,)),
        "linear2_weight": n(keys[8], (HIDDEN, FFN)),
        "linear2_bias": n(keys[9], (HIDDEN,)),
        "norm1_weight": jnp.ones((HIDDEN,), jnp.float32),
        "norm1_bias": jnp.zeros((HIDDEN,), jnp.float32),
        "norm2_weight": jnp.ones((HIDDEN,), jnp.float32),
        "norm2_bias": jnp.zeros((HIDDEN,), jnp.float32),
        "attn_fc1_weight": n(keys[10], (HIDDEN, HIDDEN)),
        "attn_fc1_bias": n(keys[11], (HIDDEN,)),
        "attn_fc2_weight": n(keys[12], (1, HIDDEN)),
        "attn_fc2_bias": n(keys[13], (1,)),
        "classifier_weight": n(keys[14], (NUM_CLASSES, HIDDEN)),
        "classifier_bias": n(keys[15], (NUM_CLASSES,)),
    }


if __name__ == "__main__":
    key = jax.random.PRNGKey(0)
    kp, kid = jax.random.split(key)
    params = init_params(kp)

    # Pack once at "model load" time; only the packed slabs enter the jitted
    # forward (no per-call transpose/pad/concat graph ahead of the kernel).
    w_slab, b_slab = pack_params(params)
    w_slab = jax.device_put(w_slab)
    b_slab = jax.device_put(b_slab)
    backbone = {k: params[k] for k in
                ("word_emb", "pos_emb", "emb_ln_weight", "emb_ln_bias")}

    input_ids = jax.random.randint(kid, (BATCH, SEQ), 0, VOCAB, dtype=jnp.int32)
    attention_mask = jnp.ones((BATCH, SEQ), jnp.int32)

    logits = roberta_sentiment_classifier_forward(
        input_ids, attention_mask, backbone, w_slab, b_slab)
    logits = jax.block_until_ready(logits)
    assert logits.shape == (BATCH, NUM_CLASSES)
    assert bool(jnp.all(jnp.isfinite(logits)))
    print("KERNEL_OK")
</pallas_src>

<mosaic_0001>
module attributes {stable_mosaic.version = 11 : i64} {
  func.func @fused_forward_kernel(%arg0: memref<16x32xf32, #tpu.memory_space<vmem>>, %arg1: memref<192x128xf32, #tpu.memory_space<vmem>>, %arg2: memref<12x128xf32, #tpu.memory_space<vmem>>, %arg3: memref<2x3xf32, #tpu.memory_space<vmem>>) attributes {dimension_semantics = [], scalar_prefetch = 0 : i64, scratch_operands = 0 : i64, tpu.core_type = #tpu.core_type<tc>} {
    %c0 = arith.constant 0 : index
    %c0_0 = arith.constant 0 : index
    %0 = vector.load %arg0[%c0, %c0_0] : memref<16x32xf32, #tpu.memory_space<vmem>>, vector<16x32xf32>
    %c0_1 = arith.constant 0 : index
    %c0_2 = arith.constant 0 : index
    %1 = vector.load %arg1[%c0_1, %c0_2] : memref<192x128xf32, #tpu.memory_space<vmem>>, vector<32x128xf32>
    %2 = vector.extract_strided_slice %1 {offsets = [0, 0], sizes = [32, 96], strides = [1, 1]} : vector<32x128xf32> to vector<32x96xf32>
    %3 = vector.extract_strided_slice %1 {offsets = [0, 96], sizes = [32, 32], strides = [1, 1]} : vector<32x128xf32> to vector<32x32xf32>
    %c32 = arith.constant 32 : index
    %c0_3 = arith.constant 0 : index
    %4 = vector.load %arg1[%c32, %c0_3] : memref<192x128xf32, #tpu.memory_space<vmem>>, vector<32x128xf32>
    %c64 = arith.constant 64 : index
    %c0_4 = arith.constant 0 : index
    %5 = vector.load %arg1[%c64, %c0_4] : memref<192x128xf32, #tpu.memory_space<vmem>>, vector<128x32xf32>
    %c64_5 = arith.constant 64 : index
    %c0_6 = arith.constant 0 : index
    %6 = vector.load %arg1[%c64_5, %c0_6] : memref<192x128xf32, #tpu.memory_space<vmem>>, vector<32x128xf32>
    %7 = vector.extract_strided_slice %6 {offsets = [0, 32], sizes = [32, 32], strides = [1, 1]} : vector<32x128xf32> to vector<32x32xf32>
    %8 = vector.extract_strided_slice %6 {offsets = [0, 64], sizes = [32, 64], strides = [1, 1]} : vector<32x128xf32> to vector<32x64xf32>
    %c0_7 = arith.constant 0 : index
    %c0_8 = arith.constant 0 : index
    %9 = vector.load %arg2[%c0_7, %c0_8] : memref<12x128xf32, #tpu.memory_space<vmem>>, vector<1x96xf32>
    %c1 = arith.constant 1 : index
    %c0_9 = arith.constant 0 : index
    %10 = vector.load %arg2[%c1, %c0_9] : memref<12x128xf32, #tpu.memory_space<vmem>>, vector<1x32xf32>
    %c2 = arith.constant 2 : index
    %c0_10 = arith.constant 0 : index
    %11 = vector.load %arg2[%c2, %c0_10] : memref<12x128xf32, #tpu.memory_space<vmem>>, vector<1x128xf32>
    %c3 = arith.constant 3 : index
    %c0_11 = arith.constant 0 : index
    %12 = vector.load %arg2[%c3, %c0_11] : memref<12x128xf32, #tpu.memory_space<vmem>>, vector<1x32xf32>
    %c4 = arith.constant 4 : index
    %c0_12 = arith.constant 0 : index
    %13 = vector.load %arg2[%c4, %c0_12] : memref<12x128xf32, #tpu.memory_space<vmem>>, vector<1x32xf32>
    %c5 = arith.constant 5 : index
    %c0_13 = arith.constant 0 : index
    %14 = vector.load %arg2[%c5, %c0_13] : memref<12x128xf32, #tpu.memory_space<vmem>>, vector<1x32xf32>
    %c6 = arith.constant 6 : index
    %c0_14 = arith.constant 0 : index
    %15 = vector.load %arg2[%c6, %c0_14] : memref<12x128xf32, #tpu.memory_space<vmem>>, vector<1x32xf32>
    %c7 = arith.constant 7 : index
    %c0_15 = arith.constant 0 : index
    %16 = vector.load %arg2[%c7, %c0_15] : memref<12x128xf32, #tpu.memory_space<vmem>>, vector<1x32xf32>
    %c8 = arith.constant 8 : index
    %c0_16 = arith.constant 0 : index
    %17 = vector.load %arg2[%c8, %c0_16] : memref<12x128xf32, #tpu.memory_space<vmem>>, vector<1x32xf32>
    %c9 = arith.constant 9 : index
    %c0_17 = arith.constant 0 : index
    %18 = vector.load %arg2[%c9, %c0_17] : memref<12x128xf32, #tpu.memory_space<vmem>>, vector<1x32xf32>
    %c10 = arith.constant 10 : index
    %c0_18 = arith.constant 0 : index
    %19 = vector.load %arg2[%c10, %c0_18] : memref<12x128xf32, #tpu.memory_space<vmem>>, vector<1x1xf32>
    %c11 = arith.constant 11 : index
    %c0_19 = arith.constant 0 : index
    %20 = vector.load %arg2[%c11, %c0_19] : memref<12x128xf32, #tpu.memory_space<vmem>>, vector<1x3xf32>
    %cst = arith.constant dense<0.000000e+00> : vector<16x96xf32>
    %21 = tpu.matmul %0, %2, %cst {dimension_numbers = #tpu.dot_dimension_numbers<[1], [0], [0], [1], [0, 0, 1, 1], [], []>} : vector<16x32xf32>, vector<32x96xf32>, vector<16x96xf32> -> vector<16x96xf32>
    %22 = vector.broadcast %9 : vector<1x96xf32> to vector<16x96xf32>
    %23 = arith.addf %21, %22 : vector<16x96xf32>
    %24 = vector.extract_strided_slice %23 {offsets = [0, 0], sizes = [16, 32], strides = [1, 1]} : vector<16x96xf32> to vector<16x32xf32>
    %25 = vector.extract_strided_slice %23 {offsets = [0, 32], sizes = [16, 32], strides = [1, 1]} : vector<16x96xf32> to vector<16x32xf32>
    %26 = vector.extract_strided_slice %23 {offsets = [0, 64], sizes = [16, 32], strides = [1, 1]} : vector<16x96xf32> to vector<16x32xf32>
    %27 = vector.extract_strided_slice %24 {offsets = [0, 0], sizes = [8, 32], strides = [1, 1]} : vector<16x32xf32> to vector<8x32xf32>
    %28 = vector.extract_strided_slice %24 {offsets = [8, 0], sizes = [8, 32], strides = [1, 1]} : vector<16x32xf32> to vector<8x32xf32>
    %29 = vector.extract_strided_slice %25 {offsets = [0, 0], sizes = [8, 32], strides = [1, 1]} : vector<16x32xf32> to vector<8x32xf32>
    %30 = vector.extract_strided_slice %25 {offsets = [8, 0], sizes = [8, 32], strides = [1, 1]} : vector<16x32xf32> to vector<8x32xf32>
    %31 = vector.extract_strided_slice %26 {offsets = [0, 0], sizes = [8, 32], strides = [1, 1]} : vector<16x32xf32> to vector<8x32xf32>
    %32 = vector.extract_strided_slice %26 {offsets = [8, 0], sizes = [8, 32], strides = [1, 1]} : vector<16x32xf32> to vector<8x32xf32>
    %33 = arith.mulf %27, %29 : vector<8x32xf32>
    %34 = arith.mulf %27, %30 : vector<8x32xf32>
    %35 = arith.mulf %28, %29 : vector<8x32xf32>
    %36 = arith.mulf %28, %30 : vector<8x32xf32>
    %37 = tpu.concatenate %33, %34, %35, %36 in 0 : vector<8x32xf32>, vector<8x32xf32>, vector<8x32xf32>, vector<8x32xf32> -> vector<32x32xf32>
    %cst_20 = arith.constant dense<0.000000e+00> : vector<32x32xf32>
    %38 = tpu.matmul %37, %7, %cst_20 {dimension_numbers = #tpu.dot_dimension_numbers<[1], [0], [0], [1], [0, 0, 1, 1], [], []>} : vector<32x32xf32>, vector<32x32xf32>, vector<32x32xf32> -> vector<32x32xf32>
    %39 = vector.extract_strided_slice %38 {offsets = [0, 0], sizes = [8, 32], strides = [1, 1]} : vector<32x32xf32> to vector<8x32xf32>
    %40 = vector.extract_strided_slice %38 {offsets = [8, 0], sizes = [8, 32], strides = [1, 1]} : vector<32x32xf32> to vector<8x32xf32>
    %41 = vector.extract_strided_slice %38 {offsets = [16, 0], sizes = [8, 32], strides = [1, 1]} : vector<32x32xf32> to vector<8x32xf32>
    %42 = vector.extract_strided_slice %38 {offsets = [24, 0], sizes = [8, 32], strides = [1, 1]} : vector<32x32xf32> to vector<8x32xf32>
    %43 = arith.maximumf %39, %40 : vector<8x32xf32>
    %44 = arith.subf %39, %43 : vector<8x32xf32>
    %45 = math.exp %44 : vector<8x32xf32>
    %46 = arith.subf %40, %43 : vector<8x32xf32>
    %47 = math.exp %46 : vector<8x32xf32>
    %48 = arith.addf %45, %47 : vector<8x32xf32>
    %49 = tpu.reciprocal %48 {approx = true} : vector<8x32xf32> -> vector<8x32xf32>
    %50 = arith.mulf %45, %49 : vector<8x32xf32>
    %51 = arith.mulf %50, %31 : vector<8x32xf32>
    %52 = arith.mulf %47, %49 : vector<8x32xf32>
    %53 = arith.mulf %52, %32 : vector<8x32xf32>
    %54 = arith.addf %51, %53 : vector<8x32xf32>
    %55 = arith.maximumf %41, %42 : vector<8x32xf32>
    %56 = arith.subf %41, %55 : vector<8x32xf32>
    %57 = math.exp %56 : vector<8x32xf32>
    %58 = arith.subf %42, %55 : vector<8x32xf32>
    %59 = math.exp %58 : vector<8x32xf32>
    %60 = arith.addf %57, %59 : vector<8x32xf32>
    %61 = tpu.reciprocal %60 {approx = true} : vector<8x32xf32> -> vector<8x32xf32>
    %62 = arith.mulf %57, %61 : vector<8x32xf32>
    %63 = arith.mulf %62, %31 : vector<8x32xf32>
    %64 = arith.mulf %59, %61 : vector<8x32xf32>
    %65 = arith.mulf %64, %32 : vector<8x32xf32>
    %66 = arith.addf %63, %65 : vector<8x32xf32>
    %67 = tpu.concatenate %54, %66 in 0 : vector<8x32xf32>, vector<8x32xf32> -> vector<16x32xf32>
    %cst_21 = arith.constant dense<0.000000e+00> : vector<16x32xf32>
    %68 = tpu.matmul %67, %3, %cst_21 {dimension_numbers = #tpu.dot_dimension_numbers<[1], [0], [0], [1], [0, 0, 1, 1], [], []>} : vector<16x32xf32>, vector<32x32xf32>, vector<16x32xf32> -> vector<16x32xf32>
    %69 = vector.broadcast %10 : vector<1x32xf32> to vector<16x32xf32>
    %70 = arith.addf %68, %69 : vector<16x32xf32>
    %71 = arith.addf %0, %70 : vector<16x32xf32>
    %cst_22 = arith.constant dense<0.000000e+00> : vector<16xf32>
    %72 = vector.multi_reduction <add>, %71, %cst_22 [1] : vector<16x32xf32> to vector<16xf32>
    %73 = vector.shape_cast %72 : vector<16xf32> to vector<16x1xf32>
    %cst_23 = arith.constant 3.200000e+01 : f32
    %74 = vector.broadcast %cst_23 : f32 to vector<16x1xf32>
    %75 = arith.divf %73, %74 : vector<16x1xf32>
    %76 = vector.broadcast %75 : vector<16x1xf32> to vector<16x32xf32>
    %77 = arith.subf %71, %76 : vector<16x32xf32>
    %78 = arith.mulf %77, %77 : vector<16x32xf32>
    %cst_24 = arith.constant dense<0.000000e+00> : vector<16xf32>
    %79 = vector.multi_reduction <add>, %78, %cst_24 [1] : vector<16x32xf32> to vector<16xf32>
    %80 = vector.shape_cast %79 : vector<16xf32> to vector<16x1xf32>
    %cst_25 = arith.constant 3.200000e+01 : f32
    %81 = vector.broadcast %cst_25 : f32 to vector<16x1xf32>
    %82 = arith.divf %80, %81 : vector<16x1xf32>
    %83 = vector.broadcast %75 : vector<16x1xf32> to vector<16x32xf32>
    %84 = arith.subf %71, %83 : vector<16x32xf32>
    %cst_26 = arith.constant 9.99999974E-6 : f32
    %85 = vector.broadcast %cst_26 : f32 to vector<16x1xf32>
    %86 = arith.addf %82, %85 : vector<16x1xf32>
    %87 = math.rsqrt %86 : vector<16x1xf32>
    %88 = vector.broadcast %87 : vector<16x1xf32> to vector<16x32xf32>
    %89 = arith.mulf %84, %88 : vector<16x32xf32>
    %90 = vector.broadcast %13 : vector<1x32xf32> to vector<16x32xf32>
    %91 = arith.mulf %89, %90 : vector<16x32xf32>
    %92 = vector.broadcast %14 : vector<1x32xf32> to vector<16x32xf32>
    %93 = arith.addf %91, %92 : vector<16x32xf32>
    %cst_27 = arith.constant dense<0.000000e+00> : vector<16x128xf32>
    %94 = tpu.matmul %93, %4, %cst_27 {dimension_numbers = #tpu.dot_dimension_numbers<[1], [0], [0], [1], [0, 0, 1, 1], [], []>} : vector<16x32xf32>, vector<32x128xf32>, vector<16x128xf32> -> vector<16x128xf32>
    %95 = vector.broadcast %11 : vector<1x128xf32> to vector<16x128xf32>
    %96 = arith.addf %94, %95 : vector<16x128xf32>
    %cst_28 = arith.constant 0.000000e+00 : f32
    %97 = vector.broadcast %cst_28 : f32 to vector<16x128xf32>
    %98 = arith.maximumf %96, %97 : vector<16x128xf32>
    %cst_29 = arith.constant dense<0.000000e+00> : vector<16x32xf32>
    %99 = tpu.matmul %98, %5, %cst_29 {dimension_numbers = #tpu.dot_dimension_numbers<[1], [0], [0], [1], [0, 0, 1, 1], [], []>} : vector<16x128xf32>, vector<128x32xf32>, vector<16x32xf32> -> vector<16x32xf32>
    %100 = vector.broadcast %12 : vector<1x32xf32> to vector<16x32xf32>
    %101 = arith.addf %99, %100 : vector<16x32xf32>
    %102 = arith.addf %93, %101 : vector<16x32xf32>
    %cst_30 = arith.constant dense<0.000000e+00> : vector<16xf32>
    %103 = vector.multi_reduction <add>, %102, %cst_30 [1] : vector<16x32xf32> to vector<16xf32>
    %104 = vector.shape_cast %103 : vector<16xf32> to vector<16x1xf32>
    %cst_31 = arith.constant 3.200000e+01 : f32
    %105 = vector.broadcast %cst_31 : f32 to vector<16x1xf32>
    %106 = arith.divf %104, %105 : vector<16x1xf32>
    %107 = vector.broadcast %106 : vector<16x1xf32> to vector<16x32xf32>
    %108 = arith.subf %102, %107 : vector<16x32xf32>
    %109 = arith.mulf %108, %108 : vector<16x32xf32>
    %cst_32 = arith.constant dense<0.000000e+00> : vector<16xf32>
    %110 = vector.multi_reduction <add>, %109, %cst_32 [1] : vector<16x32xf32> to vector<16xf32>
    %111 = vector.shape_cast %110 : vector<16xf32> to vector<16x1xf32>
    %cst_33 = arith.constant 3.200000e+01 : f32
    %112 = vector.broadcast %cst_33 : f32 to vector<16x1xf32>
    %113 = arith.divf %111, %112 : vector<16x1xf32>
    %114 = vector.broadcast %106 : vector<16x1xf32> to vector<16x32xf32>
    %115 = arith.subf %102, %114 : vector<16x32xf32>
    %cst_34 = arith.constant 9.99999974E-6 : f32
    %116 = vector.broadcast %cst_34 : f32 to vector<16x1xf32>
    %117 = arith.addf %113, %116 : vector<16x1xf32>
    %118 = math.rsqrt %117 : vector<16x1xf32>
    %119 = vector.broadcast %118 : vector<16x1xf32> to vector<16x32xf32>
    %120 = arith.mulf %115, %119 : vector<16x32xf32>
    %121 = vector.broadcast %15 : vector<1x32xf32> to vector<16x32xf32>
    %122 = arith.mulf %120, %121 : vector<16x32xf32>
    %123 = vector.broadcast %16 : vector<1x32xf32> to vector<16x32xf32>
    %124 = arith.addf %122, %123 : vector<16x32xf32>
    %cst_35 = arith.constant dense<0.000000e+00> : vector<16x64xf32>
    %125 = tpu.matmul %124, %8, %cst_35 {dimension_numbers = #tpu.dot_dimension_numbers<[1], [0], [0], [1], [0, 0, 1, 1], [], []>} : vector<16x32xf32>, vector<32x64xf32>, vector<16x64xf32> -> vector<16x64xf32>
    %126 = vector.extract_strided_slice %125 {offsets = [0, 0], sizes = [16, 32], strides = [1, 1]} : vector<16x64xf32> to vector<16x32xf32>
    %127 = vector.broadcast %17 : vector<1x32xf32> to vector<16x32xf32>
    %128 = arith.addf %126, %127 : vector<16x32xf32>
    %129 = math.tanh %128 : vector<16x32xf32>
    %130 = vector.extract_strided_slice %125 {offsets = [0, 32], sizes = [16, 3], strides = [1, 1]} : vector<16x64xf32> to vector<16x3xf32>
    %131 = vector.broadcast %18 : vector<1x32xf32> to vector<16x32xf32>
    %132 = arith.mulf %129, %131 : vector<16x32xf32>
    %cst_36 = arith.constant dense<0.000000e+00> : vector<16xf32>
    %133 = vector.multi_reduction <add>, %132, %cst_36 [1] : vector<16x32xf32> to vector<16xf32>
    %134 = vector.shape_cast %133 : vector<16xf32> to vector<16x1xf32>
    %135 = vector.broadcast %19 : vector<1x1xf32> to vector<16x1xf32>
    %136 = arith.addf %134, %135 : vector<16x1xf32>
    %137 = vector.extract_strided_slice %136 {offsets = [0, 0], sizes = [8, 1], strides = [1, 1]} : vector<16x1xf32> to vector<8x1xf32>
    %138 = vector.extract_strided_slice %136 {offsets = [8, 0], sizes = [8, 1], strides = [1, 1]} : vector<16x1xf32> to vector<8x1xf32>
    %cst_37 = arith.constant dense<0xFF800000> : vector<1xf32>
    %139 = vector.multi_reduction <maximumf>, %137, %cst_37 [0] : vector<8x1xf32> to vector<1xf32>
    %140 = vector.shape_cast %139 : vector<1xf32> to vector<1x1xf32>
    %141 = vector.broadcast %140 : vector<1x1xf32> to vector<8x1xf32>
    %142 = arith.subf %137, %141 : vector<8x1xf32>
    %143 = math.exp %142 : vector<8x1xf32>
    %cst_38 = arith.constant dense<0.000000e+00> : vector<1xf32>
    %144 = vector.multi_reduction <add>, %143, %cst_38 [0] : vector<8x1xf32> to vector<1xf32>
    %145 = vector.shape_cast %144 : vector<1xf32> to vector<1x1xf32>
    %146 = tpu.reciprocal %145 {approx = true} : vector<1x1xf32> -> vector<1x1xf32>
    %147 = vector.broadcast %146 : vector<1x1xf32> to vector<8x1xf32>
    %148 = arith.mulf %143, %147 : vector<8x1xf32>
    %cst_39 = arith.constant dense<0xFF800000> : vector<1xf32>
    %149 = vector.multi_reduction <maximumf>, %138, %cst_39 [0] : vector<8x1xf32> to vector<1xf32>
    %150 = vector.shape_cast %149 : vector<1xf32> to vector<1x1xf32>
    %151 = vector.broadcast %150 : vector<1x1xf32> to vector<8x1xf32>
    %152 = arith.subf %138, %151 : vector<8x1xf32>
    %153 = math.exp %152 : vector<8x1xf32>
    %cst_40 = arith.constant dense<0.000000e+00> : vector<1xf32>
    %154 = vector.multi_reduction <add>, %153, %cst_40 [0] : vector<8x1xf32> to vector<1xf32>
    %155 = vector.shape_cast %154 : vector<1xf32> to vector<1x1xf32>
    %156 = tpu.reciprocal %155 {approx = true} : vector<1x1xf32> -> vector<1x1xf32>
    %157 = vector.broadcast %156 : vector<1x1xf32> to vector<8x1xf32>
    %158 = arith.mulf %153, %157 : vector<8x1xf32>
    %159 = vector.extract_strided_slice %130 {offsets = [0, 0], sizes = [8, 3], strides = [1, 1]} : vector<16x3xf32> to vector<8x3xf32>
    %160 = vector.broadcast %148 : vector<8x1xf32> to vector<8x3xf32>
    %161 = arith.mulf %160, %159 : vector<8x3xf32>
    %cst_41 = arith.constant dense<0.000000e+00> : vector<3xf32>
    %162 = vector.multi_reduction <add>, %161, %cst_41 [0] : vector<8x3xf32> to vector<3xf32>
    %163 = vector.shape_cast %162 : vector<3xf32> to vector<1x3xf32>
    %164 = vector.extract_strided_slice %130 {offsets = [8, 0], sizes = [8, 3], strides = [1, 1]} : vector<16x3xf32> to vector<8x3xf32>
    %165 = vector.broadcast %158 : vector<8x1xf32> to vector<8x3xf32>
    %166 = arith.mulf %165, %164 : vector<8x3xf32>
    %cst_42 = arith.constant dense<0.000000e+00> : vector<3xf32>
    %167 = vector.multi_reduction <add>, %166, %cst_42 [0] : vector<8x3xf32> to vector<3xf32>
    %168 = vector.shape_cast %167 : vector<3xf32> to vector<1x3xf32>
    %169 = tpu.concatenate %163, %168 in 0 : vector<1x3xf32>, vector<1x3xf32> -> vector<2x3xf32>
    %170 = vector.broadcast %20 : vector<1x3xf32> to vector<2x3xf32>
    %171 = arith.addf %169, %170 : vector<2x3xf32>
    %c0_43 = arith.constant 0 : index
    %c0_44 = arith.constant 0 : index
    %172 = vector.load %arg3[%c0_43, %c0_44] : memref<2x3xf32, #tpu.memory_space<vmem>>, vector<2x3xf32>
    tpu.vector_store %arg3[%c0_43, %c0_44], %171 {strides = array<i32>} : memref<2x3xf32, #tpu.memory_space<vmem>>, vector<2x3xf32>,
    return
  }
}

</mosaic_0001>

<llo_original>
// kernel: roberta_sentiment_classifier_forward.1
$region0: #{roberta_sentiment_classifier_forward.1}
  #allocation0 [shape = 'u32[]', space=smem, size = 0x4, offset = 0x4, fixed_abs, tag = 'smem constant byte address 0x4 - core index']
  #allocation1 [shape = 'u32[144,128]{1,0:T(1,128)}', space=vmem, size = 0x12000, scoped, tag = 'internal scratch']
  %s0 = inlined_call_operand.vmem [shape: f32[16,32], index: 0, kind: input, shape index: {}]
  %s1 = inlined_call_operand.vmem [shape: f32[192,128], index: 1, kind: input, shape index: {}]
  %s2 = inlined_call_operand.vmem [shape: f32[12,128], index: 2, kind: input, shape index: {}]
  %s3 = inlined_call_operand.hbm [shape: f32[2,3], index: 3, kind: output, shape index: {}]
  %s4 = sld [smem:[#allocation0]]
  $region22: #{roberta_sentiment_classifier_forward.1} parent=0
    _
  %s6 = ssub.s32 1, %s4
  %s7 = scalar_select 0, %s6, %s4
  $region1: #{roberta_sentiment_classifier_forward.1} parent=0
    #allocation2 [shape = 'u8[1024]{0}', space=vmem, size = 0x400, scoped, tag = 'output window, operand 0, single buffered']
    #allocation3 [shape = 's32[1]{0}', space=sflag, size = 0x4, scoped, tag = 'scoped memory for roberta_sentiment_classifier_forward.1']
    %8 = vsyncpa [#allocation3], 0
    // Predicated region
    $region2: #{roberta_sentiment_classifier_forward.1} parent=1 // pred_check
      _
    $region3: #{roberta_sentiment_classifier_forward.1} parent=1 // pred_check_branch
      %10 = sbr.rel (0) target = $region5
    $region4: #{roberta_sentiment_classifier_forward.1} parent=1 // pred_region
      _
    $region5: #{roberta_sentiment_classifier_forward.1} parent=1 // pred_fallthru
      _
    // Predicated region
    $region6: #{roberta_sentiment_classifier_forward.1} parent=1 // pred_check
      _
    $region7: #{roberta_sentiment_classifier_forward.1} parent=1 // pred_check_branch
      %12 = sbr.rel (0) target = $region9
    $region8: #{roberta_sentiment_classifier_forward.1} parent=1 // pred_region
      _
    $region9: #{roberta_sentiment_classifier_forward.1} parent=1 // pred_fallthru
      _
    // Predicated region
    $region10: #{roberta_sentiment_classifier_forward.1} parent=1 // pred_check
      _
    $region11: #{roberta_sentiment_classifier_forward.1} parent=1 // pred_check_branch
      %14 = sbr.rel (0) target = $region13
    $region12: #{roberta_sentiment_classifier_forward.1} parent=1 // pred_region
      _
    $region13: #{roberta_sentiment_classifier_forward.1} parent=1 // pred_fallthru
      _
    %v15 = vld [vmem:[%s0] sm:$0xff]
    %v16 = vld [vmem:[%s0 + $0x8] sm:$0xff]
    %v17 = vld [vmem:[%s1] sm:$0xff]
    %v18 = vld [vmem:[%s1 + $0x8] sm:$0xff]
    %v19 = vld [vmem:[%s1 + $0x10] sm:$0xff]
    %v20 = vld [vmem:[%s1 + $0x18] sm:$0xff]
    %v21 = vld [vmem:[%s1 + $0x20] sm:$0xff]
    %v22 = vld [vmem:[%s1 + $0x28] sm:$0xff]
    %v23 = vld [vmem:[%s1 + $0x30] sm:$0xff]
    %v24 = vld [vmem:[%s1 + $0x38] sm:$0xff]
    %v25 = vld [vmem:[%s1 + $0x40] sm:$0xff]
    %v26 = vld [vmem:[%s1 + $0x48] sm:$0xff]
    %v27 = vld [vmem:[%s1 + $0x50] sm:$0xff]
    %v28 = vld [vmem:[%s1 + $0x58] sm:$0xff]
    %v29 = vld [vmem:[%s1 + $0x60] sm:$0xff]
    %v30 = vld [vmem:[%s1 + $0x68] sm:$0xff]
    %v31 = vld [vmem:[%s1 + $0x70] sm:$0xff]
    %v32 = vld [vmem:[%s1 + $0x78] sm:$0xff]
    %v33 = vld [vmem:[%s1 + $0x80] sm:$0xff]
    %v34 = vld [vmem:[%s1 + $0x88] sm:$0xff]
    %v35 = vld [vmem:[%s1 + $0x90] sm:$0xff]
    %v36 = vld [vmem:[%s1 + $0x98] sm:$0xff]
    %v37 = vld [vmem:[%s1 + $0xa0] sm:$0xff]
    %v38 = vld [vmem:[%s1 + $0xa8] sm:$0xff]
    %v39 = vld [vmem:[%s1 + $0xb0] sm:$0xff]
    %v40 = vld [vmem:[%s1 + $0xb8] sm:$0xff]
    %v41 = vld [vmem:[%s1 + $0x40] sm:$0xff]
    %v42 = vld [vmem:[%s1 + $0x48] sm:$0xff]
    %v43 = vld [vmem:[%s1 + $0x50] sm:$0xff]
    %v44 = vld [vmem:[%s1 + $0x58] sm:$0xff]
    %v45 = vld [vmem:[%s2] sm:$0x1]
    %v46 = vld [vmem:[%s2 + $0x1] sm:$0x1]
    %v47 = vld [vmem:[%s2 + $0x2] sm:$0x1]
    %v48 = vld [vmem:[%s2 + $0x3] sm:$0x1]
    %v49 = vld [vmem:[%s2 + $0x4] sm:$0x1]
    %v50 = vld [vmem:[%s2 + $0x5] sm:$0x1]
    %v51 = vld [vmem:[%s2 + $0x6] sm:$0x1]
    %v52 = vld [vmem:[%s2 + $0x7] sm:$0x1]
    %v53 = vld [vmem:[%s2 + $0x8] sm:$0x1]
    %v54 = vld [vmem:[%s2 + $0x9] sm:$0x1]
    %v55 = vld [vmem:[%s2 + $0xa] sm:$0x1]
    %v56 = vld [vmem:[%s2 + $0xb] sm:$0x1]
    %v57 = vlaneseq
    %v58 = vshrl.u32 %v57, 7
    %v59 = vsub.s32 0, %v58
    %v60 = vrot.slane %v45, %v59
    %vm61 = vcmask 261120
    %v63 = vsel %vm61, %v15, 0
    %v66 = vsel %vm61, %v16, 0
    %68 = vmatprep.subr.mxu0 0.0
    %69 = vmatpush1.msra.mxu0 0.0
    %70 = vmatprep.subr.mxu0 0.0
    %71 = vmatpush1.msra.mxu0 0.0
    %72 = vmatprep.subr.mxu0 0.0
    %73 = vmatpush1.msra.mxu0 0.0
    %74 = vmatprep.subr.mxu0 0.0
    %75 = vmatpush1.msra.mxu0 0.0
    %76 = vmatprep.subr.mxu0 0.0
    %77 = vmatpush1.msra.mxu0 0.0
    %78 = vmatprep.subr.mxu0 0.0
    %79 = vmatpush1.msra.mxu0 0.0
    %80 = vmatprep.subr.mxu0 0.0
    %81 = vmatpush1.msra.mxu0 0.0
    %82 = vmatprep.subr.mxu0 0.0
    %83 = vmatpush1.msra.mxu0 0.0
    %84 = vmatprep.subr.mxu0 0.0
    %85 = vmatpush1.msra.mxu0 0.0
    %86 = vmatprep.subr.mxu0 0.0
    %87 = vmatpush1.msra.mxu0 0.0
    %88 = vmatprep.subr.mxu0 0.0
    %89 = vmatpush1.msra.mxu0 0.0
    %90 = vmatprep.subr.mxu0 0.0
    %91 = vmatpush1.msra.mxu0 0.0
    %92 = vmatprep.subr.mxu0 0.0
    %93 = vmatpush1.msra.mxu0 %v20
    %94 = vmatprep.subr.mxu0 0.0
    %95 = vmatpush1.msra.mxu0 %v19
    %96 = vmatprep.subr.mxu0 0.0
    %97 = vmatpush1.msra.mxu0 %v18
    %98 = vmatprep.subr.mxu0 0.0
    %99 = vmatpush1.msra.mxu0 %v17
    %100 = vmatprep.subr.mxu0 0.0
    %101 = vmatpush2.msra.mxu0 0.0
    %102 = vmatprep.subr.mxu0 0.0
    %103 = vmatpush2.msra.mxu0 0.0
    %104 = vmatprep.subr.mxu0 0.0
    %105 = vmatpush2.msra.mxu0 0.0
    %106 = vmatprep.subr.mxu0 0.0
    %107 = vmatpush2.msra.mxu0 0.0
    %108 = vmatprep.subr.mxu0 0.0
    %109 = vmatpush2.msra.mxu0 0.0
    %110 = vmatprep.subr.mxu0 0.0
    %111 = vmatpush2.msra.mxu0 0.0
    %112 = vmatprep.subr.mxu0 0.0
    %113 = vmatpush2.msra.mxu0 0.0
    %114 = vmatprep.subr.mxu0 0.0
    %115 = vmatpush2.msra.mxu0 0.0
    %116 = vmatprep.subr.mxu0 0.0
    %117 = vmatpush2.msra.mxu0 0.0
    %118 = vmatprep.subr.mxu0 0.0
    %119 = vmatpush2.msra.mxu0 0.0
    %120 = vmatprep.subr.mxu0 0.0
    %121 = vmatpush2.msra.mxu0 0.0
    %122 = vmatprep.subr.mxu0 0.0
    %123 = vmatpush2.msra.mxu0 0.0
    %124 = vmatprep.subr.mxu0 0.0
    %125 = vmatpush2.msra.mxu0 0.0
    %126 = vmatprep.subr.mxu0 0.0
    %127 = vmatpush2.msra.mxu0 0.0
    %128 = vmatprep.subr.mxu0 0.0
    %129 = vmatpush2.msra.mxu0 0.0
    %130 = vmatprep.subr.mxu0 0.0
    %131 = vmatpush2.msra.mxu0 0.0
    %132 = vmatprep.mubr.f32.mxu0 0.0
    %133 = vmatmul.mubr.f32.gmra.mxu0 %v63
    %v134 = vpop.f32.mrf.mxu0
    %v135 = vadd.f32 %v60, %v134
    %v136 = vpop.f32.mrf.mxu0
    %137 = vmatprep.mubr.f32.mxu0 0.0
    %138 = vmatmul.mubr.f32.gmra.mxu0 %v66
    %v139 = vpop.f32.mrf.mxu0
    %v140 = vadd.f32 %v60, %v139
    %v141 = vpop.f32.mrf.mxu0
    %142 = vdwg.mxu0
    %144 = vrot.lane.b32.xlu0 %v135, 96
    %v145 = vpop.permute.xlu0 %144
    %v147 = vmul.f32 %v135, %v145
    %149 = vrot.lane.b32.xlu0 %v140, 96
    %v150 = vpop.permute.xlu0 %149
    %v152 = vmul.f32 %v135, %v150
    %v153 = vmul.f32 %v140, %v145
    %v154 = vmul.f32 %v140, %v150
    %159 = vrot.lane.b32.xlu0 %v41, 96
    %v160 = vpop.permute.xlu0 %159
    %161 = vrot.lane.b32.xlu0 %v42, 96
    %v162 = vpop.permute.xlu0 %161
    %163 = vrot.lane.b32.xlu0 %v43, 96
    %v164 = vpop.permute.xlu0 %163
    %165 = vrot.lane.b32.xlu0 %v44, 96
    %v166 = vpop.permute.xlu0 %165
    %v172 = vsel %vm61, %v147, 0
    %v175 = vsel %vm61, %v152, 0
    %v178 = vsel %vm61, %v153, 0
    %v181 = vsel %vm61, %v154, 0
    %183 = vmatprep.subr.mxu0 0.0
    %184 = vmatpush1.msra.mxu0 0.0
    %185 = vmatprep.subr.mxu0 0.0
    %186 = vmatpush1.msra.mxu0 0.0
    %187 = vmatprep.subr.mxu0 0.0
    %188 = vmatpush1.msra.mxu0 0.0
    %189 = vmatprep.subr.mxu0 0.0
    %190 = vmatpush1.msra.mxu0 0.0
    %191 = vmatprep.subr.mxu0 0.0
    %192 = vmatpush1.msra.mxu0 0.0
    %193 = vmatprep.subr.mxu0 0.0
    %194 = vmatpush1.msra.mxu0 0.0
    %195 = vmatprep.subr.mxu0 0.0
    %196 = vmatpush1.msra.mxu0 0.0
    %197 = vmatprep.subr.mxu0 0.0
    %198 = vmatpush1.msra.mxu0 0.0
    %199 = vmatprep.subr.mxu0 0.0
    %200 = vmatpush1.msra.mxu0 0.0
    %201 = vmatprep.subr.mxu0 0.0
    %202 = vmatpush1.msra.mxu0 0.0
    %203 = vmatprep.subr.mxu0 0.0
    %204 = vmatpush1.msra.mxu0 0.0
    %205 = vmatprep.subr.mxu0 0.0
    %206 = vmatpush1.msra.mxu0 0.0
    %207 = vmatprep.subr.mxu0 0.0
    %208 = vmatpush1.msra.mxu0 %v166
    %209 = vmatprep.subr.mxu0 0.0
    %210 = vmatpush1.msra.mxu0 %v164
    %211 = vmatprep.subr.mxu0 0.0
    %212 = vmatpush1.msra.mxu0 %v162
    %213 = vmatprep.subr.mxu0 0.0
    %214 = vmatpush1.msra.mxu0 %v160
    %215 = vmatprep.subr.mxu0 0.0
    %216 = vmatpush2.msra.mxu0 0.0
    %217 = vmatprep.subr.mxu0 0.0
    %218 = vmatpush2.msra.mxu0 0.0
    %219 = vmatprep.subr.mxu0 0.0
    %220 = vmatpush2.msra.mxu0 0.0
    %221 = vmatprep.subr.mxu0 0.0
    %222 = vmatpush2.msra.mxu0 0.0
    %223 = vmatprep.subr.mxu0 0.0
    %224 = vmatpush2.msra.mxu0 0.0
    %225 = vmatprep.subr.mxu0 0.0
    %226 = vmatpush2.msra.mxu0 0.0
    %227 = vmatprep.subr.mxu0 0.0
    %228 = vmatpush2.msra.mxu0 0.0
    %229 = vmatprep.subr.mxu0 0.0
    %230 = vmatpush2.msra.mxu0 0.0
    %231 = vmatprep.subr.mxu0 0.0
    %232 = vmatpush2.msra.mxu0 0.0
    %233 = vmatprep.subr.mxu0 0.0
    %234 = vmatpush2.msra.mxu0 0.0
    %235 = vmatprep.subr.mxu0 0.0
    %236 = vmatpush2.msra.mxu0 0.0
    %237 = vmatprep.subr.mxu0 0.0
    %238 = vmatpush2.msra.mxu0 0.0
    %239 = vmatprep.subr.mxu0 0.0
    %240 = vmatpush2.msra.mxu0 0.0
    %241 = vmatprep.subr.mxu0 0.0
    %242 = vmatpush2.msra.mxu0 0.0
    %243 = vmatprep.subr.mxu0 0.0
    %244 = vmatpush2.msra.mxu0 0.0
    %245 = vmatprep.subr.mxu0 0.0
    %246 = vmatpush2.msra.mxu0 0.0
    %247 = vmatprep.mubr.f32.mxu0 0.0
    %248 = vmatmul.mubr.f32.gmra.mxu0 %v172
    %v249 = vpop.f32.mrf.mxu0
    %v250 = vadd.f32 0.0, %v249
    %v251 = vpop.f32.mrf.mxu0
    %252 = vmatprep.mubr.f32.mxu0 0.0
    %253 = vmatmul.mubr.f32.gmra.mxu0 %v175
    %v254 = vpop.f32.mrf.mxu0
    %v255 = vadd.f32 0.0, %v254
    %v256 = vpop.f32.mrf.mxu0
    %257 = vmatprep.mubr.f32.mxu0 0.0
    %258 = vmatmul.mubr.f32.gmra.mxu0 %v178
    %v259 = vpop.f32.mrf.mxu0
    %v260 = vadd.f32 0.0, %v259
    %v261 = vpop.f32.mrf.mxu0
    %262 = vmatprep.mubr.f32.mxu0 0.0
    %263 = vmatmul.mubr.f32.gmra.mxu0 %v181
    %v264 = vpop.f32.mrf.mxu0
    %v265 = vadd.f32 0.0, %v264
    %v266 = vpop.f32.mrf.mxu0
    %267 = vdwg.mxu0
    %v268 = vmax.f32 %v250, %v255
    %v269 = vsub.f32 %v250, %v268
    %v270 = vmul.f32 %v269, 1.442695
    %v271 = vpow.pop %v270
    %v272 = vsub.f32 %v255, %v268
    %v273 = vmul.f32 %v272, 1.442695
    %v274 = vpow.pop %v273
    %v275 = vadd.f32 %v271, %v274
    %v276 = vrcp.pop %v275
    %v277 = vmul.f32 %v271, %v276
    %278 = vrot.lane.b32.xlu0 %v135, 64
    %v279 = vpop.permute.xlu0 %278
    %v281 = vmul.f32 %v277, %v279
    %v282 = vmul.f32 %v274, %v276
    %283 = vrot.lane.b32.xlu0 %v140, 64
    %v284 = vpop.permute.xlu0 %283
    %v286 = vmul.f32 %v282, %v284
    %v287 = vadd.f32 %v281, %v286
    %v288 = vmax.f32 %v260, %v265
    %v289 = vsub.f32 %v260, %v288
    %v290 = vmul.f32 %v289, 1.442695
    %v291 = vpow.pop %v290
    %v292 = vsub.f32 %v265, %v288
    %v293 = vmul.f32 %v292, 1.442695
    %v294 = vpow.pop %v293
    %v295 = vadd.f32 %v291, %v294
    %v296 = vrcp.pop %v295
    %v297 = vmul.f32 %v291, %v296
    %v298 = vmul.f32 %v297, %v279
    %v299 = vmul.f32 %v294, %v296
    %v300 = vmul.f32 %v299, %v284
    %v301 = vadd.f32 %v298, %v300
    %v302 = vlaneseq
    %v303 = vshrl.u32 %v302, 7
    %v304 = vsub.s32 0, %v303
    %v305 = vrot.slane %v46, %v304
    %310 = vrot.lane.b32.xlu0 %v17, 32
    %v311 = vpop.permute.xlu0 %310
    %312 = vrot.lane.b32.xlu0 %v18, 32
    %v313 = vpop.permute.xlu0 %312
    %314 = vrot.lane.b32.xlu0 %v19, 32
    %v315 = vpop.permute.xlu0 %314
    %316 = vrot.lane.b32.xlu0 %v20, 32
    %v317 = vpop.permute.xlu0 %316
    %v323 = vsel %vm61, %v287, 0
    %v326 = vsel %vm61, %v301, 0
    %328 = vmatprep.subr.mxu0 0.0
    %329 = vmatpush1.msra.mxu0 0.0
    %330 = vmatprep.subr.mxu0 0.0
    %331 = vmatpush1.msra.mxu0 0.0
    %332 = vmatprep.subr.mxu0 0.0
    %333 = vmatpush1.msra.mxu0 0.0
    %334 = vmatprep.subr.mxu0 0.0
    %335 = vmatpush1.msra.mxu0 0.0
    %336 = vmatprep.subr.mxu0 0.0
    %337 = vmatpush1.msra.mxu0 0.0
    %338 = vmatprep.subr.mxu0 0.0
    %339 = vmatpush1.msra.mxu0 0.0
    %340 = vmatprep.subr.mxu0 0.0
    %341 = vmatpush1.msra.mxu0 0.0
    %342 = vmatprep.subr.mxu0 0.0
    %343 = vmatpush1.msra.mxu0 0.0
    %344 = vmatprep.subr.mxu0 0.0
    %345 = vmatpush1.msra.mxu0 0.0
    %346 = vmatprep.subr.mxu0 0.0
    %347 = vmatpush1.msra.mxu0 0.0
    %348 = vmatprep.subr.mxu0 0.0
    %349 = vmatpush1.msra.mxu0 0.0
    %350 = vmatprep.subr.mxu0 0.0
    %351 = vmatpush1.msra.mxu0 0.0
    %352 = vmatprep.subr.mxu0 0.0
    %353 = vmatpush1.msra.mxu0 %v317
    %354 = vmatprep.subr.mxu0 0.0
    %355 = vmatpush1.msra.mxu0 %v315
    %356 = vmatprep.subr.mxu0 0.0
    %357 = vmatpush1.msra.mxu0 %v313
    %358 = vmatprep.subr.mxu0 0.0
    %359 = vmatpush1.msra.mxu0 %v311
    %360 = vmatprep.subr.mxu0 0.0
    %361 = vmatpush2.msra.mxu0 0.0
    %362 = vmatprep.subr.mxu0 0.0
    %363 = vmatpush2.msra.mxu0 0.0
    %364 = vmatprep.subr.mxu0 0.0
    %365 = vmatpush2.msra.mxu0 0.0
    %366 = vmatprep.subr.mxu0 0.0
    %367 = vmatpush2.msra.mxu0 0.0
    %368 = vmatprep.subr.mxu0 0.0
    %369 = vmatpush2.msra.mxu0 0.0
    %370 = vmatprep.subr.mxu0 0.0
    %371 = vmatpush2.msra.mxu0 0.0
    %372 = vmatprep.subr.mxu0 0.0
    %373 = vmatpush2.msra.mxu0 0.0
    %374 = vmatprep.subr.mxu0 0.0
    %375 = vmatpush2.msra.mxu0 0.0
    %376 = vmatprep.subr.mxu0 0.0
    %377 = vmatpush2.msra.mxu0 0.0
    %378 = vmatprep.subr.mxu0 0.0
    %379 = vmatpush2.msra.mxu0 0.0
    %380 = vmatprep.subr.mxu0 0.0
    %381 = vmatpush2.msra.mxu0 0.0
    %382 = vmatprep.subr.mxu0 0.0
    %383 = vmatpush2.msra.mxu0 0.0
    %384 = vmatprep.subr.mxu0 0.0
    %385 = vmatpush2.msra.mxu0 0.0
    %386 = vmatprep.subr.mxu0 0.0
    %387 = vmatpush2.msra.mxu0 0.0
    %388 = vmatprep.subr.mxu0 0.0
    %389 = vmatpush2.msra.mxu0 0.0
    %390 = vmatprep.subr.mxu0 0.0
    %391 = vmatpush2.msra.mxu0 0.0
    %392 = vmatprep.mubr.f32.mxu0 0.0
    %393 = vmatmul.mubr.f32.gmra.mxu0 %v323
    %v394 = vpop.f32.mrf.mxu0
    %v395 = vadd.f32 %v305, %v394
    %v396 = vpop.f32.mrf.mxu0
    %397 = vmatprep.mubr.f32.mxu0 0.0
    %398 = vmatmul.mubr.f32.gmra.mxu0 %v326
    %v399 = vpop.f32.mrf.mxu0
    %v400 = vadd.f32 %v305, %v399
    %v401 = vpop.f32.mrf.mxu0
    %402 = vdwg.mxu0
    %v403 = vadd.f32 %v15, %v395
    %v404 = vadd.f32 %v16, %v400
    %v405 = vsel %vm61, %v403, 0.0
    %406 = vadd.xlane.f32.xlu0 %v405
    %v407 = vpop.xlane.xlu0 %406
    %v408 = vsel %vm61, %v404, 0.0
    %409 = vadd.xlane.f32.xlu0 %v408
    %v410 = vpop.xlane.xlu0 %409
    %v411 = vrcp.pop 32.0
    %v412 = vmul.f32 %v407, %v411
    %v413 = vmul.f32 %v410, %v411
    %v414 = vsub.f32 %v403, %v412
    %v415 = vsub.f32 %v404, %v413
    %v416 = vmul.f32 %v414, %v414
    %v417 = vmul.f32 %v415, %v415
    %v418 = vsel %vm61, %v416, 0.0
    %419 = vadd.xlane.f32.xlu0 %v418
    %v420 = vpop.xlane.xlu0 %419
    %v421 = vsel %vm61, %v417, 0.0
    %422 = vadd.xlane.f32.xlu0 %v421
    %v423 = vpop.xlane.xlu0 %422
    %v424 = vmul.f32 %v420, %v411
    %v425 = vmul.f32 %v423, %v411
    %v426 = vadd.f32 %v424, 1e-05
    %v427 = vadd.f32 %v425, 1e-05
    %v428 = vrsqrt.pop %v426
    %v429 = vrsqrt.pop %v427
    %v430 = vmul.f32 %v414, %v428
    %v431 = vmul.f32 %v415, %v429
    %v432 = vlaneseq
    %v433 = vshrl.u32 %v432, 7
    %v434 = vsub.s32 0, %v433
    %v435 = vrot.slane %v49, %v434
    %v436 = vmul.f32 %v430, %v435
    %v437 = vmul.f32 %v431, %v435
    %v438 = vlaneseq
    %v439 = vshrl.u32 %v438, 7
    %v440 = vsub.s32 0, %v439
    %v441 = vrot.slane %v50, %v440
    %v442 = vadd.f32 %v436, %v441
    %v443 = vadd.f32 %v437, %v441
    %v444 = vlaneseq
    %v445 = vshrl.u32 %v444, 7
    %v446 = vsub.s32 0, %v445
    %v447 = vrot.slane %v47, %v446
    %v449 = vsel %vm61, %v442, 0
    %v452 = vsel %vm61, %v443, 0
    %454 = vmatprep.subr.mxu0 0.0
    %455 = vmatpush1.msra.mxu0 0.0
    %456 = vmatprep.subr.mxu0 0.0
    %457 = vmatpush1.msra.mxu0 0.0
    %458 = vmatprep.subr.mxu0 0.0
    %459 = vmatpush1.msra.mxu0 0.0
    %460 = vmatprep.subr.mxu0 0.0
    %461 = vmatpush1.msra.mxu0 0.0
    %462 = vmatprep.subr.mxu0 0.0
    %463 = vmatpush1.msra.mxu0 0.0
    %464 = vmatprep.subr.mxu0 0.0
    %465 = vmatpush1.msra.mxu0 0.0
    %466 = vmatprep.subr.mxu0 0.0
    %467 = vmatpush1.msra.mxu0 0.0
    %468 = vmatprep.subr.mxu0 0.0
    %469 = vmatpush1.msra.mxu0 0.0
    %470 = vmatprep.subr.mxu0 0.0
    %471 = vmatpush1.msra.mxu0 0.0
    %472 = vmatprep.subr.mxu0 0.0
    %473 = vmatpush1.msra.mxu0 0.0
    %474 = vmatprep.subr.mxu0 0.0
    %475 = vmatpush1.msra.mxu0 0.0
    %476 = vmatprep.subr.mxu0 0.0
    %477 = vmatpush1.msra.mxu0 0.0
    %478 = vmatprep.subr.mxu0 0.0
    %479 = vmatpush1.msra.mxu0 %v24
    %480 = vmatprep.subr.mxu0 0.0
    %481 = vmatpush1.msra.mxu0 %v23
    %482 = vmatprep.subr.mxu0 0.0
    %483 = vmatpush1.msra.mxu0 %v22
    %484 = vmatprep.subr.mxu0 0.0
    %485 = vmatpush1.msra.mxu0 %v21
    %486 = vmatprep.subr.mxu0 0.0
    %487 = vmatpush2.msra.mxu0 0.0
    %488 = vmatprep.subr.mxu0 0.0
    %489 = vmatpush2.msra.mxu0 0.0
    %490 = vmatprep.subr.mxu0 0.0
    %491 = vmatpush2.msra.mxu0 0.0
    %492 = vmatprep.subr.mxu0 0.0
    %493 = vmatpush2.msra.mxu0 0.0
    %494 = vmatprep.subr.mxu0 0.0
    %495 = vmatpush2.msra.mxu0 0.0
    %496 = vmatprep.subr.mxu0 0.0
    %497 = vmatpush2.msra.mxu0 0.0
    %498 = vmatprep.subr.mxu0 0.0
    %499 = vmatpush2.msra.mxu0 0.0
    %500 = vmatprep.subr.mxu0 0.0
    %501 = vmatpush2.msra.mxu0 0.0
    %502 = vmatprep.subr.mxu0 0.0
    %503 = vmatpush2.msra.mxu0 0.0
    %504 = vmatprep.subr.mxu0 0.0
    %505 = vmatpush2.msra.mxu0 0.0
    %506 = vmatprep.subr.mxu0 0.0
    %507 = vmatpush2.msra.mxu0 0.0
    %508 = vmatprep.subr.mxu0 0.0
    %509 = vmatpush2.msra.mxu0 0.0
    %510 = vmatprep.subr.mxu0 0.0
    %511 = vmatpush2.msra.mxu0 0.0
    %512 = vmatprep.subr.mxu0 0.0
    %513 = vmatpush2.msra.mxu0 0.0
    %514 = vmatprep.subr.mxu0 0.0
    %515 = vmatpush2.msra.mxu0 0.0
    %516 = vmatprep.subr.mxu0 0.0
    %517 = vmatpush2.msra.mxu0 0.0
    %518 = vmatprep.mubr.f32.mxu0 0.0
    %519 = vmatmul.mubr.f32.gmra.mxu0 %v449
    %v520 = vpop.f32.mrf.mxu0
    %v521 = vadd.f32 %v447, %v520
    %v522 = vpop.f32.mrf.mxu0
    %523 = vmatprep.mubr.f32.mxu0 0.0
    %524 = vmatmul.mubr.f32.gmra.mxu0 %v452
    %v525 = vpop.f32.mrf.mxu0
    %v526 = vadd.f32 %v447, %v525
    %v527 = vpop.f32.mrf.mxu0
    %528 = vdwg.mxu0
    %v529 = vmax.f32 %v521, 0.0
    %v530 = vmax.f32 %v526, 0.0
    %v531 = vlaneseq
    %v532 = vshrl.u32 %v531, 7
    %v533 = vsub.s32 0, %v532
    %v534 = vrot.slane %v48, %v533
    %535 = vmatprep.subr.mxu0 0.0
    %536 = vmatpush1.msra.mxu0 %v40
    %537 = vmatprep.subr.mxu0 0.0
    %538 = vmatpush1.msra.mxu0 %v39
    %539 = vmatprep.subr.mxu0 0.0
    %540 = vmatpush1.msra.mxu0 %v38
    %541 = vmatprep.subr.mxu0 0.0
    %542 = vmatpush1.msra.mxu0 %v37
    %543 = vmatprep.subr.mxu0 0.0
    %544 = vmatpush1.msra.mxu0 %v36
    %545 = vmatprep.subr.mxu0 0.0
    %546 = vmatpush1.msra.mxu0 %v35
    %547 = vmatprep.subr.mxu0 0.0
    %548 = vmatpush1.msra.mxu0 %v34
    %549 = vmatprep.subr.mxu0 0.0
    %550 = vmatpush1.msra.mxu0 %v33
    %551 = vmatprep.subr.mxu0 0.0
    %552 = vmatpush1.msra.mxu0 %v32
    %553 = vmatprep.subr.mxu0 0.0
    %554 = vmatpush1.msra.mxu0 %v31
    %555 = vmatprep.subr.mxu0 0.0
    %556 = vmatpush1.msra.mxu0 %v30
    %557 = vmatprep.subr.mxu0 0.0
    %558 = vmatpush1.msra.mxu0 %v29
    %559 = vmatprep.subr.mxu0 0.0
    %560 = vmatpush1.msra.mxu0 %v28
    %561 = vmatprep.subr.mxu0 0.0
    %562 = vmatpush1.msra.mxu0 %v27
    %563 = vmatprep.subr.mxu0 0.0
    %564 = vmatpush1.msra.mxu0 %v26
    %565 = vmatprep.subr.mxu0 0.0
    %566 = vmatpush1.msra.mxu0 %v25
    %567 = vmatprep.subr.mxu0 0.0
    %568 = vmatpush2.msra.mxu0 0.0
    %569 = vmatprep.subr.mxu0 0.0
    %570 = vmatpush2.msra.mxu0 0.0
    %571 = vmatprep.subr.mxu0 0.0
    %572 = vmatpush2.msra.mxu0 0.0
    %573 = vmatprep.subr.mxu0 0.0
    %574 = vmatpush2.msra.mxu0 0.0
    %575 = vmatprep.subr.mxu0 0.0
    %576 = vmatpush2.msra.mxu0 0.0
    %577 = vmatprep.subr.mxu0 0.0
    %578 = vmatpush2.msra.mxu0 0.0
    %579 = vmatprep.subr.mxu0 0.0
    %580 = vmatpush2.msra.mxu0 0.0
    %581 = vmatprep.subr.mxu0 0.0
    %582 = vmatpush2.msra.mxu0 0.0
    %583 = vmatprep.subr.mxu0 0.0
    %584 = vmatpush2.msra.mxu0 0.0
    %585 = vmatprep.subr.mxu0 0.0
    %586 = vmatpush2.msra.mxu0 0.0
    %587 = vmatprep.subr.mxu0 0.0
    %588 = vmatpush2.msra.mxu0 0.0
    %589 = vmatprep.subr.mxu0 0.0
    %590 = vmatpush2.msra.mxu0 0.0
    %591 = vmatprep.subr.mxu0 0.0
    %592 = vmatpush2.msra.mxu0 0.0
    %593 = vmatprep.subr.mxu0 0.0
    %594 = vmatpush2.msra.mxu0 0.0
    %595 = vmatprep.subr.mxu0 0.0
    %596 = vmatpush2.msra.mxu0 0.0
    %597 = vmatprep.subr.mxu0 0.0
    %598 = vmatpush2.msra.mxu0 0.0
    %599 = vmatprep.mubr.f32.mxu0 0.0
    %600 = vmatmul.mubr.f32.gmra.mxu0 %v529
    %v601 = vpop.f32.mrf.mxu0
    %v602 = vadd.f32 %v534, %v601
    %v603 = vpop.f32.mrf.mxu0
    %604 = vmatprep.mubr.f32.mxu0 0.0
    %605 = vmatmul.mubr.f32.gmra.mxu0 %v530
    %v606 = vpop.f32.mrf.mxu0
    %v607 = vadd.f32 %v534, %v606
    %v608 = vpop.f32.mrf.mxu0
    %609 = vdwg.mxu0
    %v610 = vadd.f32 %v442, %v602
    %v611 = vadd.f32 %v443, %v607
    %v612 = vsel %vm61, %v610, 0.0
    %613 = vadd.xlane.f32.xlu0 %v612
    %v614 = vpop.xlane.xlu0 %613
    %v615 = vsel %vm61, %v611, 0.0
    %616 = vadd.xlane.f32.xlu0 %v615
    %v617 = vpop.xlane.xlu0 %616
    %v618 = vmul.f32 %v614, %v411
    %v619 = vmul.f32 %v617, %v411
    %v620 = vsub.f32 %v610, %v618
    %v621 = vsub.f32 %v611, %v619
    %v622 = vmul.f32 %v620, %v620
    %v623 = vmul.f32 %v621, %v621
    %v624 = vsel %vm61, %v622, 0.0
    %625 = vadd.xlane.f32.xlu0 %v624
    %v626 = vpop.xlane.xlu0 %625
    %v627 = vsel %vm61, %v623, 0.0
    %628 = vadd.xlane.f32.xlu0 %v627
    %v629 = vpop.xlane.xlu0 %628
    %v630 = vmul.f32 %v626, %v411
    %v631 = vmul.f32 %v629, %v411
    %v632 = vadd.f32 %v630, 1e-05
    %v633 = vadd.f32 %v631, 1e-05
    %v634 = vrsqrt.pop %v632
    %v635 = vrsqrt.pop %v633
    %v636 = vmul.f32 %v620, %v634
    %v637 = vmul.f32 %v621, %v635
    %v638 = vlaneseq
    %v639 = vshrl.u32 %v638, 7
    %v640 = vsub.s32 0, %v639
    %v641 = vrot.slane %v51, %v640
    %v642 = vmul.f32 %v636, %v641
    %v643 = vmul.f32 %v637, %v641
    %v644 = vlaneseq
    %v645 = vshrl.u32 %v644, 7
    %v646 = vsub.s32 0, %v645
    %v647 = vrot.slane %v52, %v646
    %v648 = vadd.f32 %v642, %v647
    %v649 = vadd.f32 %v643, %v647
    %650 = vrot.lane.b32.xlu0 %v41, 64
    %v651 = vpop.permute.xlu0 %650
    %652 = vrot.lane.b32.xlu0 %v42, 64
    %v653 = vpop.permute.xlu0 %652
    %654 = vrot.lane.b32.xlu0 %v43, 64
    %v655 = vpop.permute.xlu0 %654
    %656 = vrot.lane.b32.xlu0 %v44, 64
    %v657 = vpop.permute.xlu0 %656
    %v663 = vsel %vm61, %v648, 0
    %v666 = vsel %vm61, %v649, 0
    %668 = vmatprep.subr.mxu0 0.0
    %669 = vmatpush1.msra.mxu0 0.0
    %670 = vmatprep.subr.mxu0 0.0
    %671 = vmatpush1.msra.mxu0 0.0
    %672 = vmatprep.subr.mxu0 0.0
    %673 = vmatpush1.msra.mxu0 0.0
    %674 = vmatprep.subr.mxu0 0.0
    %675 = vmatpush1.msra.mxu0 0.0
    %676 = vmatprep.subr.mxu0 0.0
    %677 = vmatpush1.msra.mxu0 0.0
    %678 = vmatprep.subr.mxu0 0.0
    %679 = vmatpush1.msra.mxu0 0.0
    %680 = vmatprep.subr.mxu0 0.0
    %681 = vmatpush1.msra.mxu0 0.0
    %682 = vmatprep.subr.mxu0 0.0
    %683 = vmatpush1.msra.mxu0 0.0
    %684 = vmatprep.subr.mxu0 0.0
    %685 = vmatpush1.msra.mxu0 0.0
    %686 = vmatprep.subr.mxu0 0.0
    %687 = vmatpush1.msra.mxu0 0.0
    %688 = vmatprep.subr.mxu0 0.0
    %689 = vmatpush1.msra.mxu0 0.0
    %690 = vmatprep.subr.mxu0 0.0
    %691 = vmatpush1.msra.mxu0 0.0
    %692 = vmatprep.subr.mxu0 0.0
    %693 = vmatpush1.msra.mxu0 %v657
    %694 = vmatprep.subr.mxu0 0.0
    %695 = vmatpush1.msra.mxu0 %v655
    %696 = vmatprep.subr.mxu0 0.0
    %697 = vmatpush1.msra.mxu0 %v653
    %698 = vmatprep.subr.mxu0 0.0
    %699 = vmatpush1.msra.mxu0 %v651
    %700 = vmatprep.subr.mxu0 0.0
    %701 = vmatpush2.msra.mxu0 0.0
    %702 = vmatprep.subr.mxu0 0.0
    %703 = vmatpush2.msra.mxu0 0.0
    %704 = vmatprep.subr.mxu0 0.0
    %705 = vmatpush2.msra.mxu0 0.0
    %706 = vmatprep.subr.mxu0 0.0
    %707 = vmatpush2.msra.mxu0 0.0
    %708 = vmatprep.subr.mxu0 0.0
    %709 = vmatpush2.msra.mxu0 0.0
    %710 = vmatprep.subr.mxu0 0.0
    %711 = vmatpush2.msra.mxu0 0.0
    %712 = vmatprep.subr.mxu0 0.0
    %713 = vmatpush2.msra.mxu0 0.0
    %714 = vmatprep.subr.mxu0 0.0
    %715 = vmatpush2.msra.mxu0 0.0
    %716 = vmatprep.subr.mxu0 0.0
    %717 = vmatpush2.msra.mxu0 0.0
    %718 = vmatprep.subr.mxu0 0.0
    %719 = vmatpush2.msra.mxu0 0.0
    %720 = vmatprep.subr.mxu0 0.0
    %721 = vmatpush2.msra.mxu0 0.0
    %722 = vmatprep.subr.mxu0 0.0
    %723 = vmatpush2.msra.mxu0 0.0
    %724 = vmatprep.subr.mxu0 0.0
    %725 = vmatpush2.msra.mxu0 0.0
    %726 = vmatprep.subr.mxu0 0.0
    %727 = vmatpush2.msra.mxu0 0.0
    %728 = vmatprep.subr.mxu0 0.0
    %729 = vmatpush2.msra.mxu0 0.0
    %730 = vmatprep.subr.mxu0 0.0
    %731 = vmatpush2.msra.mxu0 0.0
    %732 = vmatprep.mubr.f32.mxu0 0.0
    %733 = vmatmul.mubr.f32.gmra.mxu0 %v663
    %v734 = vpop.f32.mrf.mxu0
    %v735 = vadd.f32 0.0, %v734
    %v736 = vpop.f32.mrf.mxu0
    %737 = vmatprep.mubr.f32.mxu0 0.0
    %738 = vmatmul.mubr.f32.gmra.mxu0 %v666
    %v739 = vpop.f32.mrf.mxu0
    %v740 = vadd.f32 0.0, %v739
    %v741 = vpop.f32.mrf.mxu0
    %742 = vdwg.mxu0
    %v743 = vlaneseq
    %v744 = vshrl.u32 %v743, 7
    %v745 = vsub.s32 0, %v744
    %v746 = vrot.slane %v53, %v745
    %v747 = vadd.f32 %v735, %v746
    %v748 = vadd.f32 %v740, %v746
    %v749 = vtanh.pop %v747
    %v750 = vtanh.pop %v748
    %v751 = vlaneseq
    %v752 = vshrl.u32 %v751, 7
    %v753 = vsub.s32 0, %v752
    %v754 = vrot.slane %v54, %v753
    %v755 = vmul.f32 %v749, %v754
    %v756 = vmul.f32 %v750, %v754
    %v757 = vsel %vm61, %v755, 0.0
    %758 = vadd.xlane.f32.xlu0 %v757
    %v759 = vpop.xlane.xlu0 %758
    %v760 = vsel %vm61, %v756, 0.0
    %761 = vadd.xlane.f32.xlu0 %v760
    %v762 = vpop.xlane.xlu0 %761
    %v763 = vlaneseq
    %v764 = vshrl.u32 %v763, 7
    %v765 = vsub.s32 0, %v764
    %v766 = vrot.slane %v55, %v765
    %v767 = vadd.f32 %v759, %v766
    %v768 = vadd.f32 %v762, %v766
    %vm769 = vcmask 7168
    %v770 = vsel %vm769, %v767, -inf
    %v771 = vrot.slane %v770, 4
    %v772 = vmax.f32 %v770, %v771
    %v773 = vrot.slane %v772, 2
    %v774 = vmax.f32 %v772, %v773
    %v775 = vrot.slane %v774, 1
    %v776 = vmax.f32 %v774, %v775
    %v777 = vsub.f32 %v767, %v776
    %v778 = vmul.f32 %v777, 1.442695
    %v779 = vpow.pop %v778
    %v780 = vsel %vm769, %v779, 0.0
    %v781 = vrot.slane %v780, 4
    %v782 = vadd.f32 %v780, %v781
    %v783 = vrot.slane %v782, 2
    %v784 = vadd.f32 %v782, %v783
    %v785 = vrot.slane %v784, 1
    %v786 = vadd.f32 %v784, %v785
    %v787 = vrcp.pop %v786
    %v788 = vmul.f32 %v779, %v787
    %v789 = vsel %vm769, %v768, -inf
    %v790 = vrot.slane %v789, 4
    %v791 = vmax.f32 %v789, %v790
    %v792 = vrot.slane %v791, 2
    %v793 = vmax.f32 %v791, %v792
    %v794 = vrot.slane %v793, 1
    %v795 = vmax.f32 %v793, %v794
    %v796 = vsub.f32 %v768, %v795
    %v797 = vmul.f32 %v796, 1.442695
    %v798 = vpow.pop %v797
    %v799 = vsel %vm769, %v798, 0.0
    %v800 = vrot.slane %v799, 4
    %v801 = vadd.f32 %v799, %v800
    %v802 = vrot.slane %v801, 2
    %v803 = vadd.f32 %v801, %v802
    %v804 = vrot.slane %v803, 1
    %v805 = vadd.f32 %v803, %v804
    %v806 = vrcp.pop %v805
    %v807 = vmul.f32 %v798, %v806
    %809 = vset.pattern.permute.xlu0 0
    %810 = vperm.xlu0 %809, %v788
    %v811 = vpop.permute.xlu0 %810
    %v813 = vmul.f32 %v811, %v735
    %vm814 = vcmask 285952
    %v815 = vsel %vm814, %v813, 0.0
    %v816 = vrot.slane %v815, 4
    %v817 = vadd.f32 %v815, %v816
    %v818 = vrot.slane %v817, 2
    %v819 = vadd.f32 %v817, %v818
    %v820 = vrot.slane %v819, 1
    %v821 = vadd.f32 %v819, %v820
    %823 = vset.pattern.permute.xlu0 0
    %824 = vperm.xlu0 %823, %v807
    %v825 = vpop.permute.xlu0 %824
    %v827 = vmul.f32 %v825, %v740
    %v828 = vsel %vm814, %v827, 0.0
    %v829 = vrot.slane %v828, 4
    %v830 = vadd.f32 %v828, %v829
    %v831 = vrot.slane %v830, 2
    %v832 = vadd.f32 %v830, %v831
    %v833 = vrot.slane %v832, 1
    %v834 = vadd.f32 %v832, %v833
    %vm835 = vcmask 1040384
    %v836 = vsel %vm835, %v821, %v834
    %v837 = vlaneseq
    %v838 = vshrl.u32 %v837, 7
    %v839 = vsub.s32 0, %v838
    %v840 = vrot.slane %v56, %v839
    %842 = vrot.lane.b32.xlu0 %v840, 32
    %v843 = vpop.permute.xlu0 %842
    %v845 = vadd.f32 %v836, %v843
    %847 = vrot.lane.b32.xlu0 %v845, 96
    %v848 = vpop.permute.xlu0 %847
    %vm850 = vcmask 17408
    %851 = vst.msk [vmem:[#allocation2] sm:$0x3] %vm850, %v848
    // Predicated region
    $region14: #{roberta_sentiment_classifier_forward.1} parent=1 // pred_check
      _
    $region15: #{roberta_sentiment_classifier_forward.1} parent=1 // pred_check_branch
      %853 = sbr.rel (0) target = $region17
    $region16: #{roberta_sentiment_classifier_forward.1} parent=1 // pred_region
      %s855 = ssub.s32 32, 32
      %856 = vsyncadd [#allocation3], %s855
      %s858 = sshll.u32 [#allocation2], 4
      %s859 = int_to_ptr.vmem [resolvable:$true] %s858
      %861 = dma.vmem_to_hbm [thread:$0]  %s859, 32, %s3, [#allocation3]
    $region17: #{roberta_sentiment_classifier_forward.1} parent=1 // pred_fallthru
      _
    // Predicated region
    $region18: #{roberta_sentiment_classifier_forward.1} parent=1 // pred_check
      _
    $region19: #{roberta_sentiment_classifier_forward.1} parent=1 // pred_check_branch
      %863 = sbr.rel (0) target = $region21
    $region20: #{roberta_sentiment_classifier_forward.1} parent=1 // pred_region
      %864 = dma.done [#allocation3], 32
    $region21: #{roberta_sentiment_classifier_forward.1} parent=1 // pred_fallthru
      _
    %865 = vsyncpa [#allocation3], 1

</llo_original>
